<compile_context>
chip_gen: v5e
topology: v5e:2x2
jax: 0.10.0
libtpu: 0.0.40
codegen_flags: <defaults>
</compile_context>

<pallas_src>
import jax
import jax.numpy as jnp
import numpy as np
from jax import lax
from jax.experimental import pallas as pl
from jax.experimental.pallas import tpu as pltpu

EPS = 1e-5                       # PyTorch BatchNorm1d default eps
FUSED_VMEM_BUDGET = 40 << 20     # take the fully-fused path below this footprint
FUSED_VMEM_LIMIT = 48 << 20      # explicit scoped-VMEM request (fits v7x 64 MiB)


def _elu(v):
    # ELU(alpha=1): v if v > 0 else exp(v) - 1   (exp rides the EUP slot)
    return jnp.where(v > 0, v, jnp.exp(jnp.minimum(v, 0.0)) - 1.0)


def _conv3_packed(x, w, m_lo, m_hi):
    """1D conv, k=3, stride=1, pad=1 as a single packed-tap matmul.

    x:    (Cin, Lanes) activations in model dtype (channels on sublanes).
    w:    (Cout, 3*Cin) packed weights, tap order [k=0 | k=1 | k=2].
    m_lo: (1, Lanes) 0/1 mask, zero where lane % L == 0      (left pad).
    m_hi: (1, Lanes) 0/1 mask, zero where lane % L == L - 1  (right pad).
    Returns (Cout, Lanes) in f32.
    """
    lanes = x.shape[1]
    x_m = pltpu.roll(x, shift=1, axis=1) * m_lo          # x[l-1], zero at sample start
    x_p = pltpu.roll(x, shift=lanes - 1, axis=1) * m_hi  # x[l+1], zero at sample end
    x3 = jnp.concatenate([x_m, x, x_p], axis=0)          # (3*Cin, Lanes)
    return jnp.dot(w, x3, preferred_element_type=jnp.float32)


def _bn_fold(y, gamma, beta, inv_count):
    """Two-pass batch-norm fold -> per-channel (scale, shift), all f32."""
    mean = jnp.sum(y, axis=-1, keepdims=True) * inv_count        # (P, 1)
    d = y - mean
    var = jnp.sum(d * d, axis=-1, keepdims=True) * inv_count     # (P, 1)
    scale = gamma * lax.rsqrt(var + EPS)
    shift = beta - mean * scale
    return scale, shift


# --------------------------- fused whole-batch kernel ---------------------------

def fused_block_kernel(x_ref, w1_ref, w2_ref, g1_ref, b1_ref, g2_ref, b2_ref,
                       mlo_ref, mhi_ref, o_ref):
    """conv1 -> BN1 -> ELU -> conv2 -> BN2 -> +residual -> ELU, VMEM resident."""
    x = x_ref[...]                       # (C, N*L) model dtype
    m_lo = mlo_ref[...]                  # (1, N*L)
    m_hi = mhi_ref[...]
    inv_n = 1.0 / x.shape[-1]

    y1 = _conv3_packed(x, w1_ref[...], m_lo, m_hi)                     # (P, NL) f32
    s1, t1 = _bn_fold(y1, g1_ref[...], b1_ref[...], inv_n)
    z = _elu(y1 * s1 + t1)

    y2 = _conv3_packed(z.astype(x.dtype), w2_ref[...], m_lo, m_hi)     # (P, NL) f32
    s2, t2 = _bn_fold(y2, g2_ref[...], b2_ref[...], inv_n)

    out = _elu(y2 * s2 + t2 + x.astype(jnp.float32))
    o_ref[...] = out.astype(o_ref.dtype)


# --------------------- multi-pass fallback (lane-tiled grid) --------------------

def _partial_stats(y):
    """(P, Lanes) f32 -> lane-dense (P, 128): col0 = sum, col1 = sum of squares."""
    p = y.shape[0]
    s = jnp.sum(y, axis=-1, keepdims=True)
    q = jnp.sum(y * y, axis=-1, keepdims=True)
    lane = lax.broadcasted_iota(jnp.int32, (p, 128), 1)
    return jnp.where(lane == 0, s, jnp.where(lane == 1, q, 0.0))


def conv_stats_kernel(x_ref, w_ref, mlo_ref, mhi_ref, y_ref, st_ref):
    """conv1 + partial BN1 statistics for one lane tile (Nb samples)."""
    y = _conv3_packed(x_ref[...], w_ref[...], mlo_ref[...], mhi_ref[...])
    y_ref[...] = y.astype(y_ref.dtype)
    st_ref[0, :, :] = _partial_stats(y)


def bn_elu_conv_stats_kernel(y1_ref, s_ref, t_ref, w_ref, mlo_ref, mhi_ref,
                             y2_ref, st_ref):
    """BN1 scale/shift + ELU + conv2 + partial BN2 statistics."""
    z = _elu(y1_ref[...].astype(jnp.float32) * s_ref[...] + t_ref[...])
    y2 = _conv3_packed(z.astype(y1_ref.dtype), w_ref[...], mlo_ref[...], mhi_ref[...])
    y2_ref[...] = y2.astype(y2_ref.dtype)
    st_ref[0, :, :] = _partial_stats(y2)


def bn_add_elu_kernel(y2_ref, x_ref, s_ref, t_ref, o_ref):
    """BN2 scale/shift + residual add + ELU."""
    v = (y2_ref[...].astype(jnp.float32) * s_ref[...] + t_ref[...]
         + x_ref[...].astype(jnp.float32))
    o_ref[...] = _elu(v).astype(o_ref.dtype)


def _bn_scale_shift(st, gamma, beta, count):
    """Fold partial sums (T, P, 128) + gamma/beta (P,1) into scale/shift (P,1).

    One-pass E[y^2]-E[y]^2 with clamp; acceptable for roughly-centered conv
    outputs (the fused path uses the safer two-pass form).
    """
    tot = jnp.sum(st, axis=0)                       # (P, 128)
    mean = tot[:, 0:1] / count                      # (P, 1)
    var = jnp.maximum(tot[:, 1:2] / count - mean * mean, 0.0)
    scale = gamma * lax.rsqrt(var + EPS)
    shift = beta - mean * scale
    return scale, shift


def _pick_nb(n, length, target_lanes=2048):
    """Largest Nb | N with Nb*L lanes <= target and (Nb*L) % 128 == 0 (or Nb==N)."""
    legal = [nb for nb in range(1, n + 1)
             if n % nb == 0 and (nb == n or (nb * length) % 128 == 0)]
    fitting = [nb for nb in legal if nb * length <= target_lanes]
    return max(fitting) if fitting else min(legal)


def _basic_block_multipass(xf, w1p, w2p, g1, b1, g2, b2, dtype, n, c, length, p):
    nl = n * length
    nb = _pick_nb(n, length)
    lt = nb * length
    t_steps = nl // lt
    # TODO(synk): on v7x prefer an even t_steps so both TensorCores are used.

    pos = jnp.arange(lt, dtype=jnp.int32) % length
    m_lo = (pos != 0).astype(dtype).reshape(1, lt)
    m_hi = (pos != (length - 1)).astype(dtype).reshape(1, lt)

    lane_spec = lambda ch: pl.BlockSpec((ch, lt), lambda t: (0, t))
    whole = lambda shp: pl.BlockSpec(shp, lambda t, _n=len(shp): (0,) * _n)
    stats_spec = pl.BlockSpec((1, p, 128), lambda t: (t, 0, 0))
    par = pltpu.CompilerParams(dimension_semantics=("parallel",))

    # pass 1: conv1 + BN1 partial stats
    y1, st1 = pl.pallas_call(
        conv_stats_kernel,
        out_shape=(jax.ShapeDtypeStruct((p, nl), dtype),
                   jax.ShapeDtypeStruct((t_steps, p, 128), jnp.float32)),
        grid=(t_steps,),
        in_specs=[lane_spec(c), whole((p, 3 * c)), whole((1, lt)), whole((1, lt))],
        out_specs=(lane_spec(p), stats_spec),
        compiler_params=par,
    )(xf, w1p, m_lo, m_hi)
    s1, t1 = _bn_scale_shift(st1, g1, b1, nl)

    # pass 2: BN1 apply + ELU + conv2 + BN2 partial stats
    y2, st2 = pl.pallas_call(
        bn_elu_conv_stats_kernel,
        out_shape=(jax.ShapeDtypeStruct((p, nl), dtype),
                   jax.ShapeDtypeStruct((t_steps, p, 128), jnp.float32)),
        grid=(t_steps,),
        in_specs=[lane_spec(p), whole((p, 1)), whole((p, 1)),
                  whole((p, 3 * p)), whole((1, lt)), whole((1, lt))],
        out_specs=(lane_spec(p), stats_spec),
        compiler_params=par,
    )(y1, s1, t1, w2p, m_lo, m_hi)
    s2, t2 = _bn_scale_shift(st2, g2, b2, nl)

    # pass 3: BN2 apply + residual + ELU
    return pl.pallas_call(
        bn_add_elu_kernel,
        out_shape=jax.ShapeDtypeStruct((c, nl), dtype),
        grid=(t_steps,),
        in_specs=[lane_spec(p), lane_spec(c), whole((p, 1)), whole((p, 1))],
        out_specs=lane_spec(c),
        compiler_params=par,
    )(y2, xf, s2, t2)


# ----------------------------------- wrapper -----------------------------------

def basic_block_3x3(x, params, *, force_multipass=False):
    """x: (N, C, L) PyTorch NCL layout; returns (N, C, L)."""
    w1, g1, b1, w2, g2, b2 = params
    n, c, length = x.shape
    p = w1.shape[0]
    assert p == c, "residual add requires inplanes3 == planes (downsample=None)"
    dtype = x.dtype
    nl = n * length

    # Pack Conv1d weights (out, in, 3) -> (out, 3*in), tap-major [k-1 | k0 | k+1];
    # keep them in the model dtype (bf16 feeds the MXU natively if model is bf16).
    w1p = jnp.transpose(w1, (0, 2, 1)).reshape(p, 3 * c).astype(dtype)
    w2p = jnp.transpose(w2, (0, 2, 1)).reshape(p, 3 * p).astype(dtype)
    g1c = g1.astype(jnp.float32).reshape(p, 1)
    b1c = b1.astype(jnp.float32).reshape(p, 1)
    g2c = g2.astype(jnp.float32).reshape(p, 1)
    b2c = b2.astype(jnp.float32).reshape(p, 1)

    # (N, C, L) -> (C, N*L): channels on sublanes, flattened batch*length on lanes.
    xf = jnp.transpose(x, (1, 0, 2)).reshape(c, nl)

    # Rough fused-path footprint: x/out in model dtype + ~16 f32-sized temporaries.
    est_bytes = c * nl * (4 * x.dtype.itemsize + 16 * 4)
    if (not force_multipass) and est_bytes <= FUSED_VMEM_BUDGET:
        pos = jnp.arange(nl, dtype=jnp.int32) % length
        m_lo = (pos != 0).astype(dtype).reshape(1, nl)
        m_hi = (pos != (length - 1)).astype(dtype).reshape(1, nl)
        of = pl.pallas_call(
            fused_block_kernel,
            out_shape=jax.ShapeDtypeStruct((c, nl), dtype),
            compiler_params=pltpu.CompilerParams(
                vmem_limit_bytes=FUSED_VMEM_LIMIT),
        )(xf, w1p, w2p, g1c, b1c, g2c, b2c, m_lo, m_hi)
    else:
        of = _basic_block_multipass(xf, w1p, w2p, g1c, b1c, g2c, b2c,
                                    dtype, n, c, length, p)

    return jnp.transpose(of.reshape(c, n, length), (1, 0, 2))


# ---------------------------------- reference -----------------------------------

def ref_forward(x, w1, g1, b1, w2, g2, b2):
    """Pure-JAX reference matching the PyTorch forward (train-mode BN)."""
    def conv(xv, w):
        return lax.conv_general_dilated(
            xv, w, window_strides=(1,), padding=((1, 1),),
            dimension_numbers=('NCH', 'OIH', 'NCH'))

    def bn(y, g, b):
        mean = y.mean(axis=(0, 2), keepdims=True)
        var = ((y - mean) ** 2).mean(axis=(0, 2), keepdims=True)
        return (y - mean) / jnp.sqrt(var + EPS) * g.reshape(1, -1, 1) \
            + b.reshape(1, -1, 1)

    out = _elu(bn(conv(x, w1), g1, b1))
    out = bn(conv(out, w2), g2, b2) + x
    return _elu(out)


if __name__ == "__main__":
    key = jax.random.PRNGKey(0)
    N, C, L = 4, 8, 256    # batch, channels (inplanes3 == planes), length
    P = C
    ks = jax.random.split(key, 7)
    x = jax.random.normal(ks[0], (N, C, L), jnp.float32)
    w1 = 0.3 * jax.random.normal(ks[1], (P, C, 3), jnp.float32)   # conv1 weight
    w2 = 0.3 * jax.random.normal(ks[2], (P, P, 3), jnp.float32)   # conv2 weight
    g1 = 1.0 + 0.1 * jax.random.normal(ks[3], (P,), jnp.float32)  # bn1 gamma
    b1 = 0.1 * jax.random.normal(ks[4], (P,), jnp.float32)        # bn1 beta
    g2 = 1.0 + 0.1 * jax.random.normal(ks[5], (P,), jnp.float32)  # bn2 gamma
    b2 = 0.1 * jax.random.normal(ks[6], (P,), jnp.float32)        # bn2 beta
    params = (w1, g1, b1, w2, g2, b2)

    # Fully-fused whole-batch path (default for small footprints).
    out = jax.block_until_ready(basic_block_3x3(x, params))
    ref = jax.block_until_ready(ref_forward(x, *params))
    np.testing.assert_allclose(np.asarray(out), np.asarray(ref),
                               rtol=1e-4, atol=1e-4)

    # Lane-tiled multi-pass fallback (large-footprint path), forced here so it
    # is exercised too: N=4, L=1024 -> 2 samples per grid step, 2 grid steps.
    N2, L2 = 4, 1024
    x2 = jax.random.normal(ks[0], (N2, C, L2), jnp.float32)
    out2 = jax.block_until_ready(basic_block_3x3(x2, params, force_multipass=True))
    ref2 = jax.block_until_ready(ref_forward(x2, *params))
    np.testing.assert_allclose(np.asarray(out2), np.asarray(ref2),
                               rtol=1e-4, atol=1e-4)

    print("KERNEL_OK")
</pallas_src>

<mosaic_0001>
module attributes {stable_mosaic.version = 11 : i64} {
  func.func @fused_block_kernel(%arg0: memref<8x1024xf32, #tpu.memory_space<vmem>>, %arg1: memref<8x24xf32, #tpu.memory_space<vmem>>, %arg2: memref<8x24xf32, #tpu.memory_space<vmem>>, %arg3: memref<8x1xf32, #tpu.memory_space<vmem>>, %arg4: memref<8x1xf32, #tpu.memory_space<vmem>>, %arg5: memref<8x1xf32, #tpu.memory_space<vmem>>, %arg6: memref<8x1xf32, #tpu.memory_space<vmem>>, %arg7: memref<1x1024xf32, #tpu.memory_space<vmem>>, %arg8: memref<1x1024xf32, #tpu.memory_space<vmem>>, %arg9: memref<8x1024xf32, #tpu.memory_space<vmem>>) attributes {dimension_semantics = [], scalar_prefetch = 0 : i64, scratch_operands = 0 : i64, tpu.core_type = #tpu.core_type<tc>} {
    %c0 = arith.constant 0 : index
    %c0_0 = arith.constant 0 : index
    %0 = vector.load %arg0[%c0, %c0_0] : memref<8x1024xf32, #tpu.memory_space<vmem>>, vector<8x1024xf32>
    %c0_1 = arith.constant 0 : index
    %c0_2 = arith.constant 0 : index
    %1 = vector.load %arg7[%c0_1, %c0_2] : memref<1x1024xf32, #tpu.memory_space<vmem>>, vector<1x1024xf32>
    %c0_3 = arith.constant 0 : index
    %c0_4 = arith.constant 0 : index
    %2 = vector.load %arg8[%c0_3, %c0_4] : memref<1x1024xf32, #tpu.memory_space<vmem>>, vector<1x1024xf32>
    %c0_5 = arith.constant 0 : index
    %c0_6 = arith.constant 0 : index
    %3 = vector.load %arg1[%c0_5, %c0_6] : memref<8x24xf32, #tpu.memory_space<vmem>>, vector<8x24xf32>
    %c1_i32 = arith.constant 1 : i32
    %4 = tpu.dynamic_rotate %0 by %c1_i32 dim 1 : vector<8x1024xf32>, i32 -> vector<8x1024xf32>
    %5 = vector.broadcast %1 : vector<1x1024xf32> to vector<8x1024xf32>
    %6 = arith.mulf %4, %5 : vector<8x1024xf32>
    %c1023_i32 = arith.constant 1023 : i32
    %7 = tpu.dynamic_rotate %0 by %c1023_i32 dim 1 : vector<8x1024xf32>, i32 -> vector<8x1024xf32>
    %8 = vector.broadcast %2 : vector<1x1024xf32> to vector<8x1024xf32>
    %9 = arith.mulf %7, %8 : vector<8x1024xf32>
    %10 = tpu.concatenate %6, %0, %9 in 0 : vector<8x1024xf32>, vector<8x1024xf32>, vector<8x1024xf32> -> vector<24x1024xf32>
    %cst = arith.constant dense<0.000000e+00> : vector<8x1024xf32>
    %11 = tpu.matmul %3, %10, %cst {dimension_numbers = #tpu.dot_dimension_numbers<[1], [0], [0], [1], [0, 0, 1, 1], [], []>} : vector<8x24xf32>, vector<24x1024xf32>, vector<8x1024xf32> -> vector<8x1024xf32>
    %c0_7 = arith.constant 0 : index
    %c0_8 = arith.constant 0 : index
    %12 = vector.load %arg3[%c0_7, %c0_8] : memref<8x1xf32, #tpu.memory_space<vmem>>, vector<8x1xf32>
    %c0_9 = arith.constant 0 : index
    %c0_10 = arith.constant 0 : index
    %13 = vector.load %arg4[%c0_9, %c0_10] : memref<8x1xf32, #tpu.memory_space<vmem>>, vector<8x1xf32>
    %cst_11 = arith.constant dense<0.000000e+00> : vector<8xf32>
    %14 = vector.multi_reduction <add>, %11, %cst_11 [1] : vector<8x1024xf32> to vector<8xf32>
    %15 = vector.shape_cast %14 : vector<8xf32> to vector<8x1xf32>
    %cst_12 = arith.constant 9.765625E-4 : f32
    %16 = vector.broadcast %cst_12 : f32 to vector<8x1xf32>
    %17 = arith.mulf %15, %16 : vector<8x1xf32>
    %18 = vector.broadcast %17 : vector<8x1xf32> to vector<8x1024xf32>
    %19 = arith.subf %11, %18 : vector<8x1024xf32>
    %20 = arith.mulf %19, %19 : vector<8x1024xf32>
    %cst_13 = arith.constant dense<0.000000e+00> : vector<8xf32>
    %21 = vector.multi_reduction <add>, %20, %cst_13 [1] : vector<8x1024xf32> to vector<8xf32>
    %22 = vector.shape_cast %21 : vector<8xf32> to vector<8x1xf32>
    %cst_14 = arith.constant 9.765625E-4 : f32
    %23 = vector.broadcast %cst_14 : f32 to vector<8x1xf32>
    %24 = arith.mulf %22, %23 : vector<8x1xf32>
    %cst_15 = arith.constant 9.99999974E-6 : f32
    %25 = vector.broadcast %cst_15 : f32 to vector<8x1xf32>
    %26 = arith.addf %24, %25 : vector<8x1xf32>
    %27 = math.rsqrt %26 : vector<8x1xf32>
    %28 = arith.mulf %12, %27 : vector<8x1xf32>
    %29 = arith.mulf %17, %28 : vector<8x1xf32>
    %30 = arith.subf %13, %29 : vector<8x1xf32>
    %31 = vector.broadcast %28 : vector<8x1xf32> to vector<8x1024xf32>
    %32 = arith.mulf %11, %31 : vector<8x1024xf32>
    %33 = vector.broadcast %30 : vector<8x1xf32> to vector<8x1024xf32>
    %34 = arith.addf %32, %33 : vector<8x1024xf32>
    %cst_16 = arith.constant 0.000000e+00 : f32
    %35 = vector.broadcast %cst_16 : f32 to vector<8x1024xf32>
    %36 = arith.cmpf ogt, %34, %35 : vector<8x1024xf32>
    %cst_17 = arith.constant 0.000000e+00 : f32
    %37 = vector.broadcast %cst_17 : f32 to vector<8x1024xf32>
    %38 = arith.minimumf %34, %37 : vector<8x1024xf32>
    %39 = math.exp %38 : vector<8x1024xf32>
    %cst_18 = arith.constant 1.000000e+00 : f32
    %40 = vector.broadcast %cst_18 : f32 to vector<8x1024xf32>
    %41 = arith.subf %39, %40 : vector<8x1024xf32>
    %42 = arith.select %36, %34, %41 : vector<8x1024xi1>, vector<8x1024xf32>
    %c0_19 = arith.constant 0 : index
    %c0_20 = arith.constant 0 : index
    %43 = vector.load %arg2[%c0_19, %c0_20] : memref<8x24xf32, #tpu.memory_space<vmem>>, vector<8x24xf32>
    %c1_i32_21 = arith.constant 1 : i32
    %44 = tpu.dynamic_rotate %42 by %c1_i32_21 dim 1 : vector<8x1024xf32>, i32 -> vector<8x1024xf32>
    %45 = vector.broadcast %1 : vector<1x1024xf32> to vector<8x1024xf32>
    %46 = arith.mulf %44, %45 : vector<8x1024xf32>
    %c1023_i32_22 = arith.constant 1023 : i32
    %47 = tpu.dynamic_rotate %42 by %c1023_i32_22 dim 1 : vector<8x1024xf32>, i32 -> vector<8x1024xf32>
    %48 = vector.broadcast %2 : vector<1x1024xf32> to vector<8x1024xf32>
    %49 = arith.mulf %47, %48 : vector<8x1024xf32>
    %50 = tpu.concatenate %46, %42, %49 in 0 : vector<8x1024xf32>, vector<8x1024xf32>, vector<8x1024xf32> -> vector<24x1024xf32>
    %cst_23 = arith.constant dense<0.000000e+00> : vector<8x1024xf32>
    %51 = tpu.matmul %43, %50, %cst_23 {dimension_numbers = #tpu.dot_dimension_numbers<[1], [0], [0], [1], [0, 0, 1, 1], [], []>} : vector<8x24xf32>, vector<24x1024xf32>, vector<8x1024xf32> -> vector<8x1024xf32>
    %c0_24 = arith.constant 0 : index
    %c0_25 = arith.constant 0 : index
    %52 = vector.load %arg5[%c0_24, %c0_25] : memref<8x1xf32, #tpu.memory_space<vmem>>, vector<8x1xf32>
    %c0_26 = arith.constant 0 : index
    %c0_27 = arith.constant 0 : index
    %53 = vector.load %arg6[%c0_26, %c0_27] : memref<8x1xf32, #tpu.memory_space<vmem>>, vector<8x1xf32>
    %cst_28 = arith.constant dense<0.000000e+00> : vector<8xf32>
    %54 = vector.multi_reduction <add>, %51, %cst_28 [1] : vector<8x1024xf32> to vector<8xf32>
    %55 = vector.shape_cast %54 : vector<8xf32> to vector<8x1xf32>
    %cst_29 = arith.constant 9.765625E-4 : f32
    %56 = vector.broadcast %cst_29 : f32 to vector<8x1xf32>
    %57 = arith.mulf %55, %56 : vector<8x1xf32>
    %58 = vector.broadcast %57 : vector<8x1xf32> to vector<8x1024xf32>
    %59 = arith.subf %51, %58 : vector<8x1024xf32>
    %60 = arith.mulf %59, %59 : vector<8x1024xf32>
    %cst_30 = arith.constant dense<0.000000e+00> : vector<8xf32>
    %61 = vector.multi_reduction <add>, %60, %cst_30 [1] : vector<8x1024xf32> to vector<8xf32>
    %62 = vector.shape_cast %61 : vector<8xf32> to vector<8x1xf32>
    %cst_31 = arith.constant 9.765625E-4 : f32
    %63 = vector.broadcast %cst_31 : f32 to vector<8x1xf32>
    %64 = arith.mulf %62, %63 : vector<8x1xf32>
    %cst_32 = arith.constant 9.99999974E-6 : f32
    %65 = vector.broadcast %cst_32 : f32 to vector<8x1xf32>
    %66 = arith.addf %64, %65 : vector<8x1xf32>
    %67 = math.rsqrt %66 : vector<8x1xf32>
    %68 = arith.mulf %52, %67 : vector<8x1xf32>
    %69 = arith.mulf %57, %68 : vector<8x1xf32>
    %70 = arith.subf %53, %69 : vector<8x1xf32>
    %71 = vector.broadcast %68 : vector<8x1xf32> to vector<8x1024xf32>
    %72 = arith.mulf %51, %71 : vector<8x1024xf32>
    %73 = vector.broadcast %70 : vector<8x1xf32> to vector<8x1024xf32>
    %74 = arith.addf %72, %73 : vector<8x1024xf32>
    %75 = arith.addf %74, %0 : vector<8x1024xf32>
    %cst_33 = arith.constant 0.000000e+00 : f32
    %76 = vector.broadcast %cst_33 : f32 to vector<8x1024xf32>
    %77 = arith.cmpf ogt, %75, %76 : vector<8x1024xf32>
    %cst_34 = arith.constant 0.000000e+00 : f32
    %78 = vector.broadcast %cst_34 : f32 to vector<8x1024xf32>
    %79 = arith.minimumf %75, %78 : vector<8x1024xf32>
    %80 = math.exp %79 : vector<8x1024xf32>
    %cst_35 = arith.constant 1.000000e+00 : f32
    %81 = vector.broadcast %cst_35 : f32 to vector<8x1024xf32>
    %82 = arith.subf %80, %81 : vector<8x1024xf32>
    %83 = arith.select %77, %75, %82 : vector<8x1024xi1>, vector<8x1024xf32>
    %c0_36 = arith.constant 0 : index
    %c0_37 = arith.constant 0 : index
    %84 = vector.load %arg9[%c0_36, %c0_37] : memref<8x1024xf32, #tpu.memory_space<vmem>>, vector<8x1024xf32>
    tpu.vector_store %arg9[%c0_36, %c0_37], %83 {strides = array<i32>} : memref<8x1024xf32, #tpu.memory_space<vmem>>, vector<8x1024xf32>,
    return
  }
}

</mosaic_0001>

<llo_original>
// kernel: tpu_custom_call.1
$region0: #{tpu_custom_call.1}
  #allocation0 [shape = 'u32[]', space=smem, size = 0x4, offset = 0x4, fixed_abs, tag = 'smem constant byte address 0x4 - core index']
  #allocation1 [shape = 'u32[72,128]{1,0:T(1,128)}', space=vmem, size = 0x9000, scoped, tag = 'internal scratch']
  %s0 = inlined_call_operand.hbm [shape: f32[8,1024], index: 0, kind: input, shape index: {}]
  %s1 = inlined_call_operand.vmem [shape: f32[8,24], index: 1, kind: input, shape index: {}]
  %s2 = inlined_call_operand.vmem [shape: f32[8,24], index: 2, kind: input, shape index: {}]
  %s3 = inlined_call_operand.vmem [shape: f32[8,1], index: 3, kind: input, shape index: {}]
  %s4 = inlined_call_operand.vmem [shape: f32[8,1], index: 4, kind: input, shape index: {}]
  %s5 = inlined_call_operand.vmem [shape: f32[8,1], index: 5, kind: input, shape index: {}]
  %s6 = inlined_call_operand.vmem [shape: f32[8,1], index: 6, kind: input, shape index: {}]
  %s7 = inlined_call_operand.vmem [shape: f32[1,1024], index: 7, kind: input, shape index: {}]
  %s8 = inlined_call_operand.vmem [shape: f32[1,1024], index: 8, kind: input, shape index: {}]
  %s9 = inlined_call_operand.hbm [shape: f32[8,1024], index: 9, kind: output, shape index: {}]
  %s10 = sld [smem:[#allocation0]]
  $region50: #{tpu_custom_call.1} parent=0
    _
  %s12 = ssub.s32 1, %s10
  %s13 = scalar_select 0, %s12, %s10
  $region1: #{tpu_custom_call.1} parent=0
    #allocation2 [shape = 'u8[32768]{0}', space=vmem, size = 0x8000, scoped, tag = 'input window, operand 0, single buffered']
    #allocation3 [shape = 's32[1]{0}', space=sflag, size = 0x4, scoped, tag = 'scoped memory for tpu_custom_call.1']
    #allocation4 [shape = 's32[1]{0}', space=sflag, size = 0x4, scoped, tag = 'scoped memory for tpu_custom_call.1']
    #allocation5 [shape = 'u8[32768]{0}', space=vmem, size = 0x8000, scoped, tag = 'output window, operand 0, single buffered']
    %14 = vsyncpa [#allocation3], 0
    %15 = vsyncpa [#allocation4], 0
    // Predicated region
    $region2: #{tpu_custom_call.1} parent=1 // pred_check
      _
    $region3: #{tpu_custom_call.1} parent=1 // pred_check_branch
      %17 = sbr.rel (0) target = $region5
    $region4: #{tpu_custom_call.1} parent=1 // pred_region
      %19 = vsyncadd [#allocation3], 0
      %s21 = sshll.u32 %s0, 4
      %s22 = int_to_ptr.hbm [resolvable:$true] %s21
      %s23 = sshll.u32 [#allocation2], 4
      %s24 = int_to_ptr.vmem [resolvable:$true] %s23
      %26 = dma.hbm_to_vmem [thread:$0]  %s22, 1024, %s24, [#allocation3]
    $region5: #{tpu_custom_call.1} parent=1 // pred_fallthru
      _
    // Predicated region
    $region6: #{tpu_custom_call.1} parent=1 // pred_check
      _
    $region7: #{tpu_custom_call.1} parent=1 // pred_check_branch
      %28 = sbr.rel (0) target = $region9
    $region8: #{tpu_custom_call.1} parent=1 // pred_region
      _
    $region9: #{tpu_custom_call.1} parent=1 // pred_fallthru
      _
    // Predicated region
    $region10: #{tpu_custom_call.1} parent=1 // pred_check
      _
    $region11: #{tpu_custom_call.1} parent=1 // pred_check_branch
      %30 = sbr.rel (0) target = $region13
    $region12: #{tpu_custom_call.1} parent=1 // pred_region
      _
    $region13: #{tpu_custom_call.1} parent=1 // pred_fallthru
      _
    // Predicated region
    $region14: #{tpu_custom_call.1} parent=1 // pred_check
      _
    $region15: #{tpu_custom_call.1} parent=1 // pred_check_branch
      %32 = sbr.rel (0) target = $region17
    $region16: #{tpu_custom_call.1} parent=1 // pred_region
      _
    $region17: #{tpu_custom_call.1} parent=1 // pred_fallthru
      _
    // Predicated region
    $region18: #{tpu_custom_call.1} parent=1 // pred_check
      _
    $region19: #{tpu_custom_call.1} parent=1 // pred_check_branch
      %34 = sbr.rel (0) target = $region21
    $region20: #{tpu_custom_call.1} parent=1 // pred_region
      _
    $region21: #{tpu_custom_call.1} parent=1 // pred_fallthru
      _
    // Predicated region
    $region22: #{tpu_custom_call.1} parent=1 // pred_check
      _
    $region23: #{tpu_custom_call.1} parent=1 // pred_check_branch
      %36 = sbr.rel (0) target = $region25
    $region24: #{tpu_custom_call.1} parent=1 // pred_region
      _
    $region25: #{tpu_custom_call.1} parent=1 // pred_fallthru
      _
    // Predicated region
    $region26: #{tpu_custom_call.1} parent=1 // pred_check
      _
    $region27: #{tpu_custom_call.1} parent=1 // pred_check_branch
      %38 = sbr.rel (0) target = $region29
    $region28: #{tpu_custom_call.1} parent=1 // pred_region
      _
    $region29: #{tpu_custom_call.1} parent=1 // pred_fallthru
      _
    // Predicated region
    $region30: #{tpu_custom_call.1} parent=1 // pred_check
      _
    $region31: #{tpu_custom_call.1} parent=1 // pred_check_branch
      %40 = sbr.rel (0) target = $region33
    $region32: #{tpu_custom_call.1} parent=1 // pred_region
      _
    $region33: #{tpu_custom_call.1} parent=1 // pred_fallthru
      _
    // Predicated region
    $region34: #{tpu_custom_call.1} parent=1 // pred_check
      _
    $region35: #{tpu_custom_call.1} parent=1 // pred_check_branch
      %42 = sbr.rel (0) target = $region37
    $region36: #{tpu_custom_call.1} parent=1 // pred_region
      _
    $region37: #{tpu_custom_call.1} parent=1 // pred_fallthru
      _
    // Predicated region
    $region38: #{tpu_custom_call.1} parent=1 // pred_check
      _
    $region39: #{tpu_custom_call.1} parent=1 // pred_check_branch
      %44 = sbr.rel (0) target = $region41
    $region40: #{tpu_custom_call.1} parent=1 // pred_region
      %46 = dma.done [#allocation3], 1024
    $region41: #{tpu_custom_call.1} parent=1 // pred_fallthru
      _
    %v47 = vld [vmem:[#allocation2] sm:$0xff]
    %v48 = vld [vmem:[#allocation2 + $0x8] sm:$0xff]
    %v49 = vld [vmem:[#allocation2 + $0x10] sm:$0xff]
    %v50 = vld [vmem:[#allocation2 + $0x18] sm:$0xff]
    %v51 = vld [vmem:[#allocation2 + $0x20] sm:$0xff]
    %v52 = vld [vmem:[#allocation2 + $0x28] sm:$0xff]
    %v53 = vld [vmem:[#allocation2 + $0x30] sm:$0xff]
    %v54 = vld [vmem:[#allocation2 + $0x38] sm:$0xff]
    %v55 = vld [vmem:[%s7] sm:$0xff]
    %v56 = vld [vmem:[%s8] sm:$0xff]
    %v57 = vld [vmem:[%s1] sm:$0xff]
    %58 = vrot.lane.b32.xlu0 %v47, 1
    %v59 = vpop.permute.xlu0 %58
    %60 = vrot.lane.b32.xlu0 %v48, 1
    %v61 = vpop.permute.xlu0 %60
    %62 = vrot.lane.b32.xlu0 %v49, 1
    %v63 = vpop.permute.xlu0 %62
    %64 = vrot.lane.b32.xlu0 %v50, 1
    %v65 = vpop.permute.xlu0 %64
    %66 = vrot.lane.b32.xlu0 %v51, 1
    %v67 = vpop.permute.xlu0 %66
    %68 = vrot.lane.b32.xlu0 %v52, 1
    %v69 = vpop.permute.xlu0 %68
    %70 = vrot.lane.b32.xlu0 %v53, 1
    %v71 = vpop.permute.xlu0 %70
    %72 = vrot.lane.b32.xlu0 %v54, 1
    %v73 = vpop.permute.xlu0 %72
    %v74 = vlaneseq
    %v75 = vand.u32 %v74, 127
    %vm76 = vcmp.lt.s32.totalorder %v75, 1
    %v77 = vsel %vm76, %v71, %v73
    %v78 = vsel %vm76, %v69, %v71
    %v79 = vsel %vm76, %v67, %v69
    %v80 = vsel %vm76, %v65, %v67
    %v81 = vsel %vm76, %v63, %v65
    %v82 = vsel %vm76, %v61, %v63
    %v83 = vsel %vm76, %v59, %v61
    %v84 = vsel %vm76, %v73, %v59
    %v86 = vperm.slane %v55, 0
    %v87 = vperm.slane %v55, 1
    %v88 = vperm.slane %v55, 2
    %v89 = vperm.slane %v55, 3
    %v90 = vperm.slane %v55, 4
    %v91 = vperm.slane %v55, 5
    %v92 = vperm.slane %v55, 6
    %v93 = vperm.slane %v55, 7
    %v102 = vmul.f32 %v84, %v86
    %v103 = vmul.f32 %v83, %v87
    %v104 = vmul.f32 %v82, %v88
    %v105 = vmul.f32 %v81, %v89
    %v106 = vmul.f32 %v80, %v90
    %v107 = vmul.f32 %v79, %v91
    %v108 = vmul.f32 %v78, %v92
    %v109 = vmul.f32 %v77, %v93
    %110 = vrot.lane.b32.xlu0 %v47, 127
    %v111 = vpop.permute.xlu0 %110
    %112 = vrot.lane.b32.xlu0 %v48, 127
    %v113 = vpop.permute.xlu0 %112
    %114 = vrot.lane.b32.xlu0 %v49, 127
    %v115 = vpop.permute.xlu0 %114
    %116 = vrot.lane.b32.xlu0 %v50, 127
    %v117 = vpop.permute.xlu0 %116
    %118 = vrot.lane.b32.xlu0 %v51, 127
    %v119 = vpop.permute.xlu0 %118
    %120 = vrot.lane.b32.xlu0 %v52, 127
    %v121 = vpop.permute.xlu0 %120
    %122 = vrot.lane.b32.xlu0 %v53, 127
    %v123 = vpop.permute.xlu0 %122
    %124 = vrot.lane.b32.xlu0 %v54, 127
    %v125 = vpop.permute.xlu0 %124
    %vm126 = vcmp.lt.s32.totalorder %v75, 127
    %v127 = vsel %vm126, %v123, %v125
    %v128 = vsel %vm126, %v121, %v123
    %v129 = vsel %vm126, %v119, %v121
    %v130 = vsel %vm126, %v117, %v119
    %v131 = vsel %vm126, %v115, %v117
    %v132 = vsel %vm126, %v113, %v115
    %v133 = vsel %vm126, %v111, %v113
    %v134 = vsel %vm126, %v125, %v111
    %v136 = vperm.slane %v56, 0
    %v137 = vperm.slane %v56, 1
    %v138 = vperm.slane %v56, 2
    %v139 = vperm.slane %v56, 3
    %v140 = vperm.slane %v56, 4
    %v141 = vperm.slane %v56, 5
    %v142 = vperm.slane %v56, 6
    %v143 = vperm.slane %v56, 7
    %v152 = vmul.f32 %v133, %v136
    %v153 = vmul.f32 %v132, %v137
    %v154 = vmul.f32 %v131, %v138
    %v155 = vmul.f32 %v130, %v139
    %v156 = vmul.f32 %v129, %v140
    %v157 = vmul.f32 %v128, %v141
    %v158 = vmul.f32 %v127, %v142
    %v159 = vmul.f32 %v134, %v143
    %vm160 = vcmask 195584
    %v162 = vsel %vm160, %v57, 0
    %164 = vmatpush.msra.mxu0 0.0
    %165 = vmatpush.msra.mxu0 0.0
    %166 = vmatpush.msra.mxu0 0.0
    %167 = vmatpush.msra.mxu0 0.0
    %168 = vmatpush.msra.mxu0 0.0
    %169 = vmatpush.msra.mxu0 0.0
    %170 = vmatpush.msra.mxu0 0.0
    %171 = vmatpush.msra.mxu0 0.0
    %172 = vmatpush.msra.mxu0 0.0
    %173 = vmatpush.msra.mxu0 0.0
    %174 = vmatpush.msra.mxu0 0.0
    %175 = vmatpush.msra.mxu0 0.0
    %176 = vmatpush.msra.mxu0 0.0
    %177 = vmatpush.msra.mxu0 %v152
    %178 = vmatpush.msra.mxu0 %v47
    %179 = vmatpush.msra.mxu0 %v102
    %180 = vmatmul.f32.gmra.mxu0 %v162
    %v181 = vpop.f32.mrf.mxu0
    %v182 = vadd.f32 0.0, %v181
    %183 = vdwg.mxu0
    %184 = vmatpush.msra.mxu0 0.0
    %185 = vmatpush.msra.mxu0 0.0
    %186 = vmatpush.msra.mxu0 0.0
    %187 = vmatpush.msra.mxu0 0.0
    %188 = vmatpush.msra.mxu0 0.0
    %189 = vmatpush.msra.mxu0 0.0
    %190 = vmatpush.msra.mxu0 0.0
    %191 = vmatpush.msra.mxu0 0.0
    %192 = vmatpush.msra.mxu0 0.0
    %193 = vmatpush.msra.mxu0 0.0
    %194 = vmatpush.msra.mxu0 0.0
    %195 = vmatpush.msra.mxu0 0.0
    %196 = vmatpush.msra.mxu0 0.0
    %197 = vmatpush.msra.mxu0 %v153
    %198 = vmatpush.msra.mxu0 %v48
    %199 = vmatpush.msra.mxu0 %v103
    %200 = vmatmul.f32.gmra.mxu0 %v162
    %v201 = vpop.f32.mrf.mxu0
    %v202 = vadd.f32 0.0, %v201
    %203 = vdwg.mxu0
    %204 = vmatpush.msra.mxu0 0.0
    %205 = vmatpush.msra.mxu0 0.0
    %206 = vmatpush.msra.mxu0 0.0
    %207 = vmatpush.msra.mxu0 0.0
    %208 = vmatpush.msra.mxu0 0.0
    %209 = vmatpush.msra.mxu0 0.0
    %210 = vmatpush.msra.mxu0 0.0
    %211 = vmatpush.msra.mxu0 0.0
    %212 = vmatpush.msra.mxu0 0.0
    %213 = vmatpush.msra.mxu0 0.0
    %214 = vmatpush.msra.mxu0 0.0
    %215 = vmatpush.msra.mxu0 0.0
    %216 = vmatpush.msra.mxu0 0.0
    %217 = vmatpush.msra.mxu0 %v154
    %218 = vmatpush.msra.mxu0 %v49
    %219 = vmatpush.msra.mxu0 %v104
    %220 = vmatmul.f32.gmra.mxu0 %v162
    %v221 = vpop.f32.mrf.mxu0
    %v222 = vadd.f32 0.0, %v221
    %223 = vdwg.mxu0
    %224 = vmatpush.msra.mxu0 0.0
    %225 = vmatpush.msra.mxu0 0.0
    %226 = vmatpush.msra.mxu0 0.0
    %227 = vmatpush.msra.mxu0 0.0
    %228 = vmatpush.msra.mxu0 0.0
    %229 = vmatpush.msra.mxu0 0.0
    %230 = vmatpush.msra.mxu0 0.0
    %231 = vmatpush.msra.mxu0 0.0
    %232 = vmatpush.msra.mxu0 0.0
    %233 = vmatpush.msra.mxu0 0.0
    %234 = vmatpush.msra.mxu0 0.0
    %235 = vmatpush.msra.mxu0 0.0
    %236 = vmatpush.msra.mxu0 0.0
    %237 = vmatpush.msra.mxu0 %v155
    %238 = vmatpush.msra.mxu0 %v50
    %239 = vmatpush.msra.mxu0 %v105
    %240 = vmatmul.f32.gmra.mxu0 %v162
    %v241 = vpop.f32.mrf.mxu0
    %v242 = vadd.f32 0.0, %v241
    %243 = vdwg.mxu0
    %244 = vmatpush.msra.mxu0 0.0
    %245 = vmatpush.msra.mxu0 0.0
    %246 = vmatpush.msra.mxu0 0.0
    %247 = vmatpush.msra.mxu0 0.0
    %248 = vmatpush.msra.mxu0 0.0
    %249 = vmatpush.msra.mxu0 0.0
    %250 = vmatpush.msra.mxu0 0.0
    %251 = vmatpush.msra.mxu0 0.0
    %252 = vmatpush.msra.mxu0 0.0
    %253 = vmatpush.msra.mxu0 0.0
    %254 = vmatpush.msra.mxu0 0.0
    %255 = vmatpush.msra.mxu0 0.0
    %256 = vmatpush.msra.mxu0 0.0
    %257 = vmatpush.msra.mxu0 %v156
    %258 = vmatpush.msra.mxu0 %v51
    %259 = vmatpush.msra.mxu0 %v106
    %260 = vmatmul.f32.gmra.mxu0 %v162
    %v261 = vpop.f32.mrf.mxu0
    %v262 = vadd.f32 0.0, %v261
    %263 = vdwg.mxu0
    %264 = vmatpush.msra.mxu0 0.0
    %265 = vmatpush.msra.mxu0 0.0
    %266 = vmatpush.msra.mxu0 0.0
    %267 = vmatpush.msra.mxu0 0.0
    %268 = vmatpush.msra.mxu0 0.0
    %269 = vmatpush.msra.mxu0 0.0
    %270 = vmatpush.msra.mxu0 0.0
    %271 = vmatpush.msra.mxu0 0.0
    %272 = vmatpush.msra.mxu0 0.0
    %273 = vmatpush.msra.mxu0 0.0
    %274 = vmatpush.msra.mxu0 0.0
    %275 = vmatpush.msra.mxu0 0.0
    %276 = vmatpush.msra.mxu0 0.0
    %277 = vmatpush.msra.mxu0 %v157
    %278 = vmatpush.msra.mxu0 %v52
    %279 = vmatpush.msra.mxu0 %v107
    %280 = vmatmul.f32.gmra.mxu0 %v162
    %v281 = vpop.f32.mrf.mxu0
    %v282 = vadd.f32 0.0, %v281
    %283 = vdwg.mxu0
    %284 = vmatpush.msra.mxu0 0.0
    %285 = vmatpush.msra.mxu0 0.0
    %286 = vmatpush.msra.mxu0 0.0
    %287 = vmatpush.msra.mxu0 0.0
    %288 = vmatpush.msra.mxu0 0.0
    %289 = vmatpush.msra.mxu0 0.0
    %290 = vmatpush.msra.mxu0 0.0
    %291 = vmatpush.msra.mxu0 0.0
    %292 = vmatpush.msra.mxu0 0.0
    %293 = vmatpush.msra.mxu0 0.0
    %294 = vmatpush.msra.mxu0 0.0
    %295 = vmatpush.msra.mxu0 0.0
    %296 = vmatpush.msra.mxu0 0.0
    %297 = vmatpush.msra.mxu0 %v158
    %298 = vmatpush.msra.mxu0 %v53
    %299 = vmatpush.msra.mxu0 %v108
    %300 = vmatmul.f32.gmra.mxu0 %v162
    %v301 = vpop.f32.mrf.mxu0
    %v302 = vadd.f32 0.0, %v301
    %303 = vdwg.mxu0
    %304 = vmatpush.msra.mxu0 0.0
    %305 = vmatpush.msra.mxu0 0.0
    %306 = vmatpush.msra.mxu0 0.0
    %307 = vmatpush.msra.mxu0 0.0
    %308 = vmatpush.msra.mxu0 0.0
    %309 = vmatpush.msra.mxu0 0.0
    %310 = vmatpush.msra.mxu0 0.0
    %311 = vmatpush.msra.mxu0 0.0
    %312 = vmatpush.msra.mxu0 0.0
    %313 = vmatpush.msra.mxu0 0.0
    %314 = vmatpush.msra.mxu0 0.0
    %315 = vmatpush.msra.mxu0 0.0
    %316 = vmatpush.msra.mxu0 0.0
    %317 = vmatpush.msra.mxu0 %v159
    %318 = vmatpush.msra.mxu0 %v54
    %319 = vmatpush.msra.mxu0 %v109
    %320 = vmatmul.f32.gmra.mxu0 %v162
    %v321 = vpop.f32.mrf.mxu0
    %v322 = vadd.f32 0.0, %v321
    %323 = vdwg.mxu0
    %v324 = vld [vmem:[%s3] sm:$0xff]
    %v325 = vld [vmem:[%s4] sm:$0xff]
    %v326 = vadd.f32 %v182, %v202
    %v327 = vadd.f32 %v326, %v222
    %v328 = vadd.f32 %v327, %v242
    %v329 = vadd.f32 %v328, %v262
    %v330 = vadd.f32 %v329, %v282
    %v331 = vadd.f32 %v330, %v302
    %v332 = vadd.f32 %v331, %v322
    %333 = vadd.xlane.f32.xlu0 %v332
    %v334 = vpop.xlane.xlu0 %333
    %v335 = vmul.f32 %v334, 0.0009765625
    %v336 = vsub.f32 %v182, %v335
    %v337 = vsub.f32 %v202, %v335
    %v338 = vsub.f32 %v222, %v335
    %v339 = vsub.f32 %v242, %v335
    %v340 = vsub.f32 %v262, %v335
    %v341 = vsub.f32 %v282, %v335
    %v342 = vsub.f32 %v302, %v335
    %v343 = vsub.f32 %v322, %v335
    %v344 = vmul.f32 %v336, %v336
    %v345 = vmul.f32 %v337, %v337
    %v346 = vmul.f32 %v338, %v338
    %v347 = vmul.f32 %v339, %v339
    %v348 = vmul.f32 %v340, %v340
    %v349 = vmul.f32 %v341, %v341
    %v350 = vmul.f32 %v342, %v342
    %v351 = vmul.f32 %v343, %v343
    %v352 = vadd.f32 %v344, %v345
    %v353 = vadd.f32 %v352, %v346
    %v354 = vadd.f32 %v353, %v347
    %v355 = vadd.f32 %v354, %v348
    %v356 = vadd.f32 %v355, %v349
    %v357 = vadd.f32 %v356, %v350
    %v358 = vadd.f32 %v357, %v351
    %359 = vadd.xlane.f32.xlu0 %v358
    %v360 = vpop.xlane.xlu0 %359
    %v361 = vmul.f32 %v360, 0.0009765625
    %v362 = vadd.f32 %v361, 1e-05
    %v363 = vrsqrt.pop %v362
    %v364 = vmul.f32 %v363, %v362
    %v365 = vmul.f32 %v364, %v363
    %v366 = vmul.f32 0.5, %v365
    %v367 = vsub.f32 1.5, %v366
    %v368 = vmul.f32 %v363, %v367
    %vm369 = vweird.f32 %v362
    %vm370 = vweird.f32 %v363
    %vm371 = vmor %vm369, %vm370
    %v372 = vsel %vm371, %v363, %v368
    %v373 = vmul.f32 %v324, %v372
    %v374 = vmul.f32 %v335, %v373
    %v375 = vsub.f32 %v325, %v374
    %377 = vset.pattern.permute.xlu0 0
    %378 = vperm.xlu0 %377, %v373
    %v379 = vpop.permute.xlu0 %378
    %v381 = vmul.f32 %v182, %v379
    %v382 = vmul.f32 %v202, %v379
    %v383 = vmul.f32 %v222, %v379
    %v384 = vmul.f32 %v242, %v379
    %v385 = vmul.f32 %v262, %v379
    %v386 = vmul.f32 %v282, %v379
    %v387 = vmul.f32 %v302, %v379
    %v388 = vmul.f32 %v322, %v379
    %390 = vset.pattern.permute.xlu0 0
    %391 = vperm.xlu0 %390, %v375
    %v392 = vpop.permute.xlu0 %391
    %v394 = vadd.f32 %v381, %v392
    %v395 = vadd.f32 %v382, %v392
    %v396 = vadd.f32 %v383, %v392
    %v397 = vadd.f32 %v384, %v392
    %v398 = vadd.f32 %v385, %v392
    %v399 = vadd.f32 %v386, %v392
    %v400 = vadd.f32 %v387, %v392
    %v401 = vadd.f32 %v388, %v392
    %vm402 = vcmp.gt.f32.partialorder %v394, 0.0
    %vm403 = vcmp.gt.f32.partialorder %v395, 0.0
    %vm404 = vcmp.gt.f32.partialorder %v396, 0.0
    %vm405 = vcmp.gt.f32.partialorder %v397, 0.0
    %vm406 = vcmp.gt.f32.partialorder %v398, 0.0
    %vm407 = vcmp.gt.f32.partialorder %v399, 0.0
    %vm408 = vcmp.gt.f32.partialorder %v400, 0.0
    %vm409 = vcmp.gt.f32.partialorder %v401, 0.0
    %v410 = vmin.f32 %v394, 0.0
    %v411 = vmin.f32 %v395, 0.0
    %v412 = vmin.f32 %v396, 0.0
    %v413 = vmin.f32 %v397, 0.0
    %v414 = vmin.f32 %v398, 0.0
    %v415 = vmin.f32 %v399, 0.0
    %v416 = vmin.f32 %v400, 0.0
    %v417 = vmin.f32 %v401, 0.0
    %v418 = vmul.f32 %v410, 1.442695
    %v419 = vpow.pop %v418
    %v420 = vmul.f32 %v411, 1.442695
    %v421 = vpow.pop %v420
    %v422 = vmul.f32 %v412, 1.442695
    %v423 = vpow.pop %v422
    %v424 = vmul.f32 %v413, 1.442695
    %v425 = vpow.pop %v424
    %v426 = vmul.f32 %v414, 1.442695
    %v427 = vpow.pop %v426
    %v428 = vmul.f32 %v415, 1.442695
    %v429 = vpow.pop %v428
    %v430 = vmul.f32 %v416, 1.442695
    %v431 = vpow.pop %v430
    %v432 = vmul.f32 %v417, 1.442695
    %v433 = vpow.pop %v432
    %v434 = vsub.f32 %v419, 1.0
    %v435 = vsub.f32 %v421, 1.0
    %v436 = vsub.f32 %v423, 1.0
    %v437 = vsub.f32 %v425, 1.0
    %v438 = vsub.f32 %v427, 1.0
    %v439 = vsub.f32 %v429, 1.0
    %v440 = vsub.f32 %v431, 1.0
    %v441 = vsub.f32 %v433, 1.0
    %v442 = vsel %vm402, %v394, %v434
    %v443 = vsel %vm403, %v395, %v435
    %v444 = vsel %vm404, %v396, %v436
    %v445 = vsel %vm405, %v397, %v437
    %v446 = vsel %vm406, %v398, %v438
    %v447 = vsel %vm407, %v399, %v439
    %v448 = vsel %vm408, %v400, %v440
    %v449 = vsel %vm409, %v401, %v441
    %v450 = vld [vmem:[%s2] sm:$0xff]
    %451 = vrot.lane.b32.xlu0 %v442, 1
    %v452 = vpop.permute.xlu0 %451
    %453 = vrot.lane.b32.xlu0 %v443, 1
    %v454 = vpop.permute.xlu0 %453
    %455 = vrot.lane.b32.xlu0 %v444, 1
    %v456 = vpop.permute.xlu0 %455
    %457 = vrot.lane.b32.xlu0 %v445, 1
    %v458 = vpop.permute.xlu0 %457
    %459 = vrot.lane.b32.xlu0 %v446, 1
    %v460 = vpop.permute.xlu0 %459
    %461 = vrot.lane.b32.xlu0 %v447, 1
    %v462 = vpop.permute.xlu0 %461
    %463 = vrot.lane.b32.xlu0 %v448, 1
    %v464 = vpop.permute.xlu0 %463
    %465 = vrot.lane.b32.xlu0 %v449, 1
    %v466 = vpop.permute.xlu0 %465
    %v467 = vsel %vm76, %v464, %v466
    %v468 = vsel %vm76, %v462, %v464
    %v469 = vsel %vm76, %v460, %v462
    %v470 = vsel %vm76, %v458, %v460
    %v471 = vsel %vm76, %v456, %v458
    %v472 = vsel %vm76, %v454, %v456
    %v473 = vsel %vm76, %v452, %v454
    %v474 = vsel %vm76, %v466, %v452
    %v475 = vmul.f32 %v474, %v86
    %v476 = vmul.f32 %v473, %v87
    %v477 = vmul.f32 %v472, %v88
    %v478 = vmul.f32 %v471, %v89
    %v479 = vmul.f32 %v470, %v90
    %v480 = vmul.f32 %v469, %v91
    %v481 = vmul.f32 %v468, %v92
    %v482 = vmul.f32 %v467, %v93
    %483 = vrot.lane.b32.xlu0 %v442, 127
    %v484 = vpop.permute.xlu0 %483
    %485 = vrot.lane.b32.xlu0 %v443, 127
    %v486 = vpop.permute.xlu0 %485
    %487 = vrot.lane.b32.xlu0 %v444, 127
    %v488 = vpop.permute.xlu0 %487
    %489 = vrot.lane.b32.xlu0 %v445, 127
    %v490 = vpop.permute.xlu0 %489
    %491 = vrot.lane.b32.xlu0 %v446, 127
    %v492 = vpop.permute.xlu0 %491
    %493 = vrot.lane.b32.xlu0 %v447, 127
    %v494 = vpop.permute.xlu0 %493
    %495 = vrot.lane.b32.xlu0 %v448, 127
    %v496 = vpop.permute.xlu0 %495
    %497 = vrot.lane.b32.xlu0 %v449, 127
    %v498 = vpop.permute.xlu0 %497
    %v499 = vsel %vm126, %v496, %v498
    %v500 = vsel %vm126, %v494, %v496
    %v501 = vsel %vm126, %v492, %v494
    %v502 = vsel %vm126, %v490, %v492
    %v503 = vsel %vm126, %v488, %v490
    %v504 = vsel %vm126, %v486, %v488
    %v505 = vsel %vm126, %v484, %v486
    %v506 = vsel %vm126, %v498, %v484
    %v507 = vmul.f32 %v505, %v136
    %v508 = vmul.f32 %v504, %v137
    %v509 = vmul.f32 %v503, %v138
    %v510 = vmul.f32 %v502, %v139
    %v511 = vmul.f32 %v501, %v140
    %v512 = vmul.f32 %v500, %v141
    %v513 = vmul.f32 %v499, %v142
    %v514 = vmul.f32 %v506, %v143
    %v516 = vsel %vm160, %v450, 0
    %518 = vmatpush.msra.mxu0 0.0
    %519 = vmatpush.msra.mxu0 0.0
    %520 = vmatpush.msra.mxu0 0.0
    %521 = vmatpush.msra.mxu0 0.0
    %522 = vmatpush.msra.mxu0 0.0
    %523 = vmatpush.msra.mxu0 0.0
    %524 = vmatpush.msra.mxu0 0.0
    %525 = vmatpush.msra.mxu0 0.0
    %526 = vmatpush.msra.mxu0 0.0
    %527 = vmatpush.msra.mxu0 0.0
    %528 = vmatpush.msra.mxu0 0.0
    %529 = vmatpush.msra.mxu0 0.0
    %530 = vmatpush.msra.mxu0 0.0
    %531 = vmatpush.msra.mxu0 %v507
    %532 = vmatpush.msra.mxu0 %v442
    %533 = vmatpush.msra.mxu0 %v475
    %534 = vmatmul.f32.gmra.mxu0 %v516
    %v535 = vpop.f32.mrf.mxu0
    %v536 = vadd.f32 0.0, %v535
    %537 = vdwg.mxu0
    %538 = vmatpush.msra.mxu0 0.0
    %539 = vmatpush.msra.mxu0 0.0
    %540 = vmatpush.msra.mxu0 0.0
    %541 = vmatpush.msra.mxu0 0.0
    %542 = vmatpush.msra.mxu0 0.0
    %543 = vmatpush.msra.mxu0 0.0
    %544 = vmatpush.msra.mxu0 0.0
    %545 = vmatpush.msra.mxu0 0.0
    %546 = vmatpush.msra.mxu0 0.0
    %547 = vmatpush.msra.mxu0 0.0
    %548 = vmatpush.msra.mxu0 0.0
    %549 = vmatpush.msra.mxu0 0.0
    %550 = vmatpush.msra.mxu0 0.0
    %551 = vmatpush.msra.mxu0 %v508
    %552 = vmatpush.msra.mxu0 %v443
    %553 = vmatpush.msra.mxu0 %v476
    %554 = vmatmul.f32.gmra.mxu0 %v516
    %v555 = vpop.f32.mrf.mxu0
    %v556 = vadd.f32 0.0, %v555
    %557 = vdwg.mxu0
    %558 = vmatpush.msra.mxu0 0.0
    %559 = vmatpush.msra.mxu0 0.0
    %560 = vmatpush.msra.mxu0 0.0
    %561 = vmatpush.msra.mxu0 0.0
    %562 = vmatpush.msra.mxu0 0.0
    %563 = vmatpush.msra.mxu0 0.0
    %564 = vmatpush.msra.mxu0 0.0
    %565 = vmatpush.msra.mxu0 0.0
    %566 = vmatpush.msra.mxu0 0.0
    %567 = vmatpush.msra.mxu0 0.0
    %568 = vmatpush.msra.mxu0 0.0
    %569 = vmatpush.msra.mxu0 0.0
    %570 = vmatpush.msra.mxu0 0.0
    %571 = vmatpush.msra.mxu0 %v509
    %572 = vmatpush.msra.mxu0 %v444
    %573 = vmatpush.msra.mxu0 %v477
    %574 = vmatmul.f32.gmra.mxu0 %v516
    %v575 = vpop.f32.mrf.mxu0
    %v576 = vadd.f32 0.0, %v575
    %577 = vdwg.mxu0
    %578 = vmatpush.msra.mxu0 0.0
    %579 = vmatpush.msra.mxu0 0.0
    %580 = vmatpush.msra.mxu0 0.0
    %581 = vmatpush.msra.mxu0 0.0
    %582 = vmatpush.msra.mxu0 0.0
    %583 = vmatpush.msra.mxu0 0.0
    %584 = vmatpush.msra.mxu0 0.0
    %585 = vmatpush.msra.mxu0 0.0
    %586 = vmatpush.msra.mxu0 0.0
    %587 = vmatpush.msra.mxu0 0.0
    %588 = vmatpush.msra.mxu0 0.0
    %589 = vmatpush.msra.mxu0 0.0
    %590 = vmatpush.msra.mxu0 0.0
    %591 = vmatpush.msra.mxu0 %v510
    %592 = vmatpush.msra.mxu0 %v445
    %593 = vmatpush.msra.mxu0 %v478
    %594 = vmatmul.f32.gmra.mxu0 %v516
    %v595 = vpop.f32.mrf.mxu0
    %v596 = vadd.f32 0.0, %v595
    %597 = vdwg.mxu0
    %598 = vmatpush.msra.mxu0 0.0
    %599 = vmatpush.msra.mxu0 0.0
    %600 = vmatpush.msra.mxu0 0.0
    %601 = vmatpush.msra.mxu0 0.0
    %602 = vmatpush.msra.mxu0 0.0
    %603 = vmatpush.msra.mxu0 0.0
    %604 = vmatpush.msra.mxu0 0.0
    %605 = vmatpush.msra.mxu0 0.0
    %606 = vmatpush.msra.mxu0 0.0
    %607 = vmatpush.msra.mxu0 0.0
    %608 = vmatpush.msra.mxu0 0.0
    %609 = vmatpush.msra.mxu0 0.0
    %610 = vmatpush.msra.mxu0 0.0
    %611 = vmatpush.msra.mxu0 %v511
    %612 = vmatpush.msra.mxu0 %v446
    %613 = vmatpush.msra.mxu0 %v479
    %614 = vmatmul.f32.gmra.mxu0 %v516
    %v615 = vpop.f32.mrf.mxu0
    %v616 = vadd.f32 0.0, %v615
    %617 = vdwg.mxu0
    %618 = vmatpush.msra.mxu0 0.0
    %619 = vmatpush.msra.mxu0 0.0
    %620 = vmatpush.msra.mxu0 0.0
    %621 = vmatpush.msra.mxu0 0.0
    %622 = vmatpush.msra.mxu0 0.0
    %623 = vmatpush.msra.mxu0 0.0
    %624 = vmatpush.msra.mxu0 0.0
    %625 = vmatpush.msra.mxu0 0.0
    %626 = vmatpush.msra.mxu0 0.0
    %627 = vmatpush.msra.mxu0 0.0
    %628 = vmatpush.msra.mxu0 0.0
    %629 = vmatpush.msra.mxu0 0.0
    %630 = vmatpush.msra.mxu0 0.0
    %631 = vmatpush.msra.mxu0 %v512
    %632 = vmatpush.msra.mxu0 %v447
    %633 = vmatpush.msra.mxu0 %v480
    %634 = vmatmul.f32.gmra.mxu0 %v516
    %v635 = vpop.f32.mrf.mxu0
    %v636 = vadd.f32 0.0, %v635
    %637 = vdwg.mxu0
    %638 = vmatpush.msra.mxu0 0.0
    %639 = vmatpush.msra.mxu0 0.0
    %640 = vmatpush.msra.mxu0 0.0
    %641 = vmatpush.msra.mxu0 0.0
    %642 = vmatpush.msra.mxu0 0.0
    %643 = vmatpush.msra.mxu0 0.0
    %644 = vmatpush.msra.mxu0 0.0
    %645 = vmatpush.msra.mxu0 0.0
    %646 = vmatpush.msra.mxu0 0.0
    %647 = vmatpush.msra.mxu0 0.0
    %648 = vmatpush.msra.mxu0 0.0
    %649 = vmatpush.msra.mxu0 0.0
    %650 = vmatpush.msra.mxu0 0.0
    %651 = vmatpush.msra.mxu0 %v513
    %652 = vmatpush.msra.mxu0 %v448
    %653 = vmatpush.msra.mxu0 %v481
    %654 = vmatmul.f32.gmra.mxu0 %v516
    %v655 = vpop.f32.mrf.mxu0
    %v656 = vadd.f32 0.0, %v655
    %657 = vdwg.mxu0
    %658 = vmatpush.msra.mxu0 0.0
    %659 = vmatpush.msra.mxu0 0.0
    %660 = vmatpush.msra.mxu0 0.0
    %661 = vmatpush.msra.mxu0 0.0
    %662 = vmatpush.msra.mxu0 0.0
    %663 = vmatpush.msra.mxu0 0.0
    %664 = vmatpush.msra.mxu0 0.0
    %665 = vmatpush.msra.mxu0 0.0
    %666 = vmatpush.msra.mxu0 0.0
    %667 = vmatpush.msra.mxu0 0.0
    %668 = vmatpush.msra.mxu0 0.0
    %669 = vmatpush.msra.mxu0 0.0
    %670 = vmatpush.msra.mxu0 0.0
    %671 = vmatpush.msra.mxu0 %v514
    %672 = vmatpush.msra.mxu0 %v449
    %673 = vmatpush.msra.mxu0 %v482
    %674 = vmatmul.f32.gmra.mxu0 %v516
    %v675 = vpop.f32.mrf.mxu0
    %v676 = vadd.f32 0.0, %v675
    %677 = vdwg.mxu0
    %v678 = vld [vmem:[%s5] sm:$0xff]
    %v679 = vld [vmem:[%s6] sm:$0xff]
    %v680 = vadd.f32 %v536, %v556
    %v681 = vadd.f32 %v680, %v576
    %v682 = vadd.f32 %v681, %v596
    %v683 = vadd.f32 %v682, %v616
    %v684 = vadd.f32 %v683, %v636
    %v685 = vadd.f32 %v684, %v656
    %v686 = vadd.f32 %v685, %v676
    %687 = vadd.xlane.f32.xlu0 %v686
    %v688 = vpop.xlane.xlu0 %687
    %v689 = vmul.f32 %v688, 0.0009765625
    %v690 = vsub.f32 %v536, %v689
    %v691 = vsub.f32 %v556, %v689
    %v692 = vsub.f32 %v576, %v689
    %v693 = vsub.f32 %v596, %v689
    %v694 = vsub.f32 %v616, %v689
    %v695 = vsub.f32 %v636, %v689
    %v696 = vsub.f32 %v656, %v689
    %v697 = vsub.f32 %v676, %v689
    %v698 = vmul.f32 %v690, %v690
    %v699 = vmul.f32 %v691, %v691
    %v700 = vmul.f32 %v692, %v692
    %v701 = vmul.f32 %v693, %v693
    %v702 = vmul.f32 %v694, %v694
    %v703 = vmul.f32 %v695, %v695
    %v704 = vmul.f32 %v696, %v696
    %v705 = vmul.f32 %v697, %v697
    %v706 = vadd.f32 %v698, %v699
    %v707 = vadd.f32 %v706, %v700
    %v708 = vadd.f32 %v707, %v701
    %v709 = vadd.f32 %v708, %v702
    %v710 = vadd.f32 %v709, %v703
    %v711 = vadd.f32 %v710, %v704
    %v712 = vadd.f32 %v711, %v705
    %713 = vadd.xlane.f32.xlu0 %v712
    %v714 = vpop.xlane.xlu0 %713
    %v715 = vmul.f32 %v714, 0.0009765625
    %v716 = vadd.f32 %v715, 1e-05
    %v717 = vrsqrt.pop %v716
    %v718 = vmul.f32 %v717, %v716
    %v719 = vmul.f32 %v718, %v717
    %v720 = vmul.f32 0.5, %v719
    %v721 = vsub.f32 1.5, %v720
    %v722 = vmul.f32 %v717, %v721
    %vm723 = vweird.f32 %v716
    %vm724 = vweird.f32 %v717
    %vm725 = vmor %vm723, %vm724
    %v726 = vsel %vm725, %v717, %v722
    %v727 = vmul.f32 %v678, %v726
    %v728 = vmul.f32 %v689, %v727
    %v729 = vsub.f32 %v679, %v728
    %731 = vset.pattern.permute.xlu0 0
    %732 = vperm.xlu0 %731, %v727
    %v733 = vpop.permute.xlu0 %732
    %v735 = vmul.f32 %v536, %v733
    %v736 = vmul.f32 %v556, %v733
    %v737 = vmul.f32 %v576, %v733
    %v738 = vmul.f32 %v596, %v733
    %v739 = vmul.f32 %v616, %v733
    %v740 = vmul.f32 %v636, %v733
    %v741 = vmul.f32 %v656, %v733
    %v742 = vmul.f32 %v676, %v733
    %744 = vset.pattern.permute.xlu0 0
    %745 = vperm.xlu0 %744, %v729
    %v746 = vpop.permute.xlu0 %745
    %v748 = vadd.f32 %v735, %v746
    %v749 = vadd.f32 %v736, %v746
    %v750 = vadd.f32 %v737, %v746
    %v751 = vadd.f32 %v738, %v746
    %v752 = vadd.f32 %v739, %v746
    %v753 = vadd.f32 %v740, %v746
    %v754 = vadd.f32 %v741, %v746
    %v755 = vadd.f32 %v742, %v746
    %v756 = vadd.f32 %v748, %v47
    %v757 = vadd.f32 %v749, %v48
    %v758 = vadd.f32 %v750, %v49
    %v759 = vadd.f32 %v751, %v50
    %v760 = vadd.f32 %v752, %v51
    %v761 = vadd.f32 %v753, %v52
    %v762 = vadd.f32 %v754, %v53
    %v763 = vadd.f32 %v755, %v54
    %vm764 = vcmp.gt.f32.partialorder %v756, 0.0
    %vm765 = vcmp.gt.f32.partialorder %v757, 0.0
    %vm766 = vcmp.gt.f32.partialorder %v758, 0.0
    %vm767 = vcmp.gt.f32.partialorder %v759, 0.0
    %vm768 = vcmp.gt.f32.partialorder %v760, 0.0
    %vm769 = vcmp.gt.f32.partialorder %v761, 0.0
    %vm770 = vcmp.gt.f32.partialorder %v762, 0.0
    %vm771 = vcmp.gt.f32.partialorder %v763, 0.0
    %v772 = vmin.f32 %v756, 0.0
    %v773 = vmin.f32 %v757, 0.0
    %v774 = vmin.f32 %v758, 0.0
    %v775 = vmin.f32 %v759, 0.0
    %v776 = vmin.f32 %v760, 0.0
    %v777 = vmin.f32 %v761, 0.0
    %v778 = vmin.f32 %v762, 0.0
    %v779 = vmin.f32 %v763, 0.0
    %v780 = vmul.f32 %v772, 1.442695
    %v781 = vpow.pop %v780
    %v782 = vmul.f32 %v773, 1.442695
    %v783 = vpow.pop %v782
    %v784 = vmul.f32 %v774, 1.442695
    %v785 = vpow.pop %v784
    %v786 = vmul.f32 %v775, 1.442695
    %v787 = vpow.pop %v786
    %v788 = vmul.f32 %v776, 1.442695
    %v789 = vpow.pop %v788
    %v790 = vmul.f32 %v777, 1.442695
    %v791 = vpow.pop %v790
    %v792 = vmul.f32 %v778, 1.442695
    %v793 = vpow.pop %v792
    %v794 = vmul.f32 %v779, 1.442695
    %v795 = vpow.pop %v794
    %v796 = vsub.f32 %v781, 1.0
    %v797 = vsub.f32 %v783, 1.0
    %v798 = vsub.f32 %v785, 1.0
    %v799 = vsub.f32 %v787, 1.0
    %v800 = vsub.f32 %v789, 1.0
    %v801 = vsub.f32 %v791, 1.0
    %v802 = vsub.f32 %v793, 1.0
    %v803 = vsub.f32 %v795, 1.0
    %v804 = vsel %vm764, %v756, %v796
    %v805 = vsel %vm765, %v757, %v797
    %v806 = vsel %vm766, %v758, %v798
    %v807 = vsel %vm767, %v759, %v799
    %v808 = vsel %vm768, %v760, %v800
    %v809 = vsel %vm769, %v761, %v801
    %v810 = vsel %vm770, %v762, %v802
    %v811 = vsel %vm771, %v763, %v803
    %812 = vst [vmem:[#allocation5] sm:$0xff] %v804
    %813 = vst [vmem:[#allocation5 + $0x8] sm:$0xff] %v805
    %814 = vst [vmem:[#allocation5 + $0x10] sm:$0xff] %v806
    %815 = vst [vmem:[#allocation5 + $0x18] sm:$0xff] %v807
    %816 = vst [vmem:[#allocation5 + $0x20] sm:$0xff] %v808
    %817 = vst [vmem:[#allocation5 + $0x28] sm:$0xff] %v809
    %818 = vst [vmem:[#allocation5 + $0x30] sm:$0xff] %v810
    %819 = vst [vmem:[#allocation5 + $0x38] sm:$0xff] %v811
    // Predicated region
    $region42: #{tpu_custom_call.1} parent=1 // pred_check
      _
    $region43: #{tpu_custom_call.1} parent=1 // pred_check_branch
      %821 = sbr.rel (0) target = $region45
    $region44: #{tpu_custom_call.1} parent=1 // pred_region
      %823 = vsyncadd [#allocation4], 0
      %s825 = sshll.u32 [#allocation5], 4
      %s826 = int_to_ptr.vmem [resolvable:$true] %s825
      %s827 = sshll.u32 %s9, 4
      %s828 = int_to_ptr.hbm [resolvable:$true] %s827
      %830 = dma.vmem_to_hbm [thread:$0]  %s826, 1024, %s828, [#allocation4]
    $region45: #{tpu_custom_call.1} parent=1 // pred_fallthru
      _
    // Predicated region
    $region46: #{tpu_custom_call.1} parent=1 // pred_check
      _
    $region47: #{tpu_custom_call.1} parent=1 // pred_check_branch
      %832 = sbr.rel (0) target = $region49
    $region48: #{tpu_custom_call.1} parent=1 // pred_region
      %834 = dma.done [#allocation4], 1024
    $region49: #{tpu_custom_call.1} parent=1 // pred_fallthru
      _
    %835 = vsyncpa [#allocation3], 1
    %836 = vsyncpa [#allocation4], 1

</llo_original>
